<compile_context>
chip_gen: v7x
topology: tpu7x:2x2x1
jax: 0.10.0
libtpu: 0.0.40
codegen_flags: <defaults>
</compile_context>

<pallas_src>
import functools

import jax
import jax.numpy as jnp
from jax.experimental import pallas as pl
from jax.experimental.pallas import tpu as pltpu


# ----------------------------------------------------------------------------
# Kernels
# ----------------------------------------------------------------------------
def _stats_kernel(x_ref, s1_ref, s2_ref, *, hw_total, t_hw, ragged):
    # x_ref:  (C, t_hw)  one image / one HW tile
    # s1_ref: (C, 1)     per-channel sum        (f32, resident accumulator)
    # s2_ref: (C, 1)     per-channel sum of x^2 (f32, resident accumulator)
    j = pl.program_id(1)

    @pl.when(j == 0)
    def _():
        s1_ref[...] = jnp.zeros_like(s1_ref)
        s2_ref[...] = jnp.zeros_like(s2_ref)

    x = x_ref[...].astype(jnp.float32)
    if ragged:
        # Last HW tile is partial: zero out OOB lanes before the lane reduction.
        lane = jax.lax.broadcasted_iota(jnp.int32, (1, t_hw), 1)
        valid = (j * t_hw + lane) < hw_total
        x = jnp.where(valid, x, 0.0)
    s1_ref[...] += jnp.sum(x, axis=1, keepdims=True)
    s2_ref[...] += jnp.sum(x * x, axis=1, keepdims=True)


def _outconv_kernel(x_ref, scale_ref, shift_ref, w_ref, b_ref, o_ref):
    # x_ref:     (C, t_hw)     activations for one image / one HW tile
    # scale_ref: (C, 1)        folded BN scale (compute dtype)
    # shift_ref: (C, 1)        folded BN shift (compute dtype)
    # w_ref:     (Cout, C)     1x1 conv weight (compute dtype)
    # b_ref:     (Cout, 1)     conv bias (f32)
    # o_ref:     (Cout, t_hw)  lane-dense output tile
    cdt = scale_ref.dtype
    xb = x_ref[...].astype(cdt) * scale_ref[...] + shift_ref[...]   # BN fold
    xb = jnp.maximum(xb, 0.0)                                       # ReLU
    # Channel contraction on the MXU; spatial axis stays in the lane dim.
    acc = jnp.dot(w_ref[...], xb, preferred_element_type=jnp.float32)
    o_ref[...] = (acc + b_ref[...]).astype(o_ref.dtype)


# ----------------------------------------------------------------------------
# Sizing helpers (generation-aware)
# ----------------------------------------------------------------------------
def _round_up(x, m):
    return (x + m - 1) // m * m


def _cdiv(a, b):
    return -(-a // b)


def _tpu_vmem_and_kind():
    kind = ""
    try:
        kind = jax.devices()[0].device_kind.lower()
    except Exception:
        pass
    cap = None
    try:
        cap = int(pltpu.get_tpu_info().vmem_capacity_bytes)
    except Exception:
        cap = None
    if cap is None or cap <= 0:
        # Heuristic fallback: v5e / v6e have 128 MiB per core, v7x has 64 MiB.
        cap = (128 << 20) if ("v5" in kind or "v6" in kind) else (64 << 20)
    return cap, kind


def _compute_dtype(x_dtype, device_kind):
    # bf16 elementwise path only on bf16-native VPUs (v6e / v7x); v5e stays f32.
    if x_dtype == jnp.bfloat16 and "v5" not in device_kind:
        return jnp.bfloat16
    return jnp.float32


def _choose_hw_tile(hw, c_in, c_out, n_batch, itemsize, tile_budget_bytes,
                    max_tile=131072):
    """Lane-dense HW tile (multiple of 128) sized to the VMEM budget."""
    hw128 = _round_up(hw, 128)
    per_lane = 2 * (c_in + c_out) * itemsize          # double-buffered in + out
    cap = (tile_budget_bytes // per_lane) // 128 * 128
    cap = max(cap, 128)
    cap = min(cap, max_tile, hw128)
    n_tiles = _cdiv(hw128, cap)
    tile = _round_up(_cdiv(hw128, n_tiles), 128)
    # Keep >= 2 grid steps per TensorCore (v7x megacore + double buffering)
    # when the problem is big enough; shrink the tile for tiny N*HW.
    while tile > 128 and n_batch * _cdiv(hw, tile) < 4:
        tile = _round_up(_cdiv(tile, 2), 128)
    return tile


# ----------------------------------------------------------------------------
# Forward
# ----------------------------------------------------------------------------
def out_conv_forward(x_nchw, gamma, beta, conv_w, conv_b, *, eps=1e-5):
    """OutConv forward: BatchNorm2d (training-mode batch stats) -> ReLU -> 1x1 Conv2d."""
    N, C, H, W = x_nchw.shape
    Cout = conv_w.shape[0]
    HW = H * W

    x3 = x_nchw.reshape(N, C, HW)                     # free (contiguous) reshape

    itemsize = jnp.dtype(x_nchw.dtype).itemsize
    vmem_cap, kind = _tpu_vmem_and_kind()
    vmem_limit = max(32 << 20, min(int(0.75 * vmem_cap), 96 << 20))
    tile_budget = int(0.6 * vmem_limit)               # double-buffered block budget
    t_hw = _choose_hw_tile(HW, C, Cout, N, itemsize, tile_budget)
    n_tiles = _cdiv(HW, t_hw)
    grid = (N, n_tiles)

    # ---- Pass 1: per-channel sum / sum-of-squares in one fused HBM read of x.
    stats = functools.partial(_stats_kernel, hw_total=HW, t_hw=t_hw,
                              ragged=(HW % t_hw != 0))
    s1, s2 = pl.pallas_call(
        stats,
        out_shape=(jax.ShapeDtypeStruct((N, C, 1), jnp.float32),
                   jax.ShapeDtypeStruct((N, C, 1), jnp.float32)),
        grid=grid,
        in_specs=[pl.BlockSpec((None, C, t_hw), lambda n, j: (n, 0, j))],
        out_specs=(pl.BlockSpec((None, C, 1), lambda n, j: (n, 0, 0)),
                   pl.BlockSpec((None, C, 1), lambda n, j: (n, 0, 0))),
        compiler_params=pltpu.CompilerParams(
            dimension_semantics=("parallel", "arbitrary"),
            vmem_limit_bytes=vmem_limit),
        cost_estimate=pl.CostEstimate(
            flops=3 * N * C * HW, transcendentals=0,
            bytes_accessed=N * C * HW * itemsize + 2 * N * C * 4),
    )(x3)

    cnt = jnp.float32(N * HW)
    mean = jnp.sum(s1, axis=0).reshape(C) / cnt
    # TODO(synk): E[x^2]-E[x]^2 can cancel when |mean| >> std; a Welford/two-pass
    # reduction would be more robust (f32 accumulation is adequate here).
    var = jnp.maximum(jnp.sum(s2, axis=0).reshape(C) / cnt - mean * mean, 0.0)
    scale = gamma.astype(jnp.float32) / jnp.sqrt(var + eps)        # (C,)
    shift = beta.astype(jnp.float32) - mean * scale                # (C,)
    # TODO(synk): running_mean/running_var momentum update (training side effect)
    # of nn.BatchNorm2d is not reproduced; only the forward output is.

    # ---- Pass 2: fused BN -> ReLU -> 1x1 conv, lane-dense ragged-safe tiles.
    cdt = _compute_dtype(x_nchw.dtype, kind)
    wm = conv_w.reshape(Cout, C).astype(cdt)
    scale2d = scale.reshape(C, 1).astype(cdt)
    shift2d = shift.reshape(C, 1).astype(cdt)
    bias2d = conv_b.reshape(Cout, 1).astype(jnp.float32)

    out3 = pl.pallas_call(
        _outconv_kernel,
        out_shape=jax.ShapeDtypeStruct((N, Cout, HW), x_nchw.dtype),
        grid=grid,
        in_specs=[
            pl.BlockSpec((None, C, t_hw), lambda n, j: (n, 0, j)),   # activations
            pl.BlockSpec((C, 1), lambda n, j: (0, 0)),               # BN scale
            pl.BlockSpec((C, 1), lambda n, j: (0, 0)),               # BN shift
            pl.BlockSpec((Cout, C), lambda n, j: (0, 0)),            # conv weight
            pl.BlockSpec((Cout, 1), lambda n, j: (0, 0)),            # conv bias
        ],
        out_specs=pl.BlockSpec((None, Cout, t_hw), lambda n, j: (n, 0, j)),
        compiler_params=pltpu.CompilerParams(
            dimension_semantics=("parallel", "parallel"),    # v7x megacore shard
            vmem_limit_bytes=vmem_limit),
        cost_estimate=pl.CostEstimate(
            flops=2 * N * HW * C * Cout, transcendentals=0,
            bytes_accessed=N * HW * (C + Cout) * itemsize
            + (2 * C + Cout * C + Cout) * 4),
    )(x3, scale2d, shift2d, wm, bias2d)

    return out3.reshape(N, Cout, H, W)                # free (contiguous) reshape


# ----------------------------------------------------------------------------
if __name__ == "__main__":
    key = jax.random.PRNGKey(0)
    N, Cin, Cout, H, W = 2, 8, 4, 16, 16

    k_x, k_w, k_b = jax.random.split(key, 3)
    x = jax.random.normal(k_x, (N, Cin, H, W), dtype=jnp.float32)

    # BatchNorm2d default init (PyTorch): weight=1, bias=0.
    gamma = jnp.ones((Cin,), dtype=jnp.float32)
    beta = jnp.zeros((Cin,), dtype=jnp.float32)
    # Conv2d(Cin, Cout, kernel_size=1): weight (Cout, Cin, 1, 1), bias (Cout,)
    conv_w = 0.1 * jax.random.normal(k_w, (Cout, Cin, 1, 1), dtype=jnp.float32)
    conv_b = 0.1 * jax.random.normal(k_b, (Cout,), dtype=jnp.float32)

    out = out_conv_forward(x, gamma, beta, conv_w, conv_b)
    jax.block_until_ready(out)

    # Pure-JAX reference (training-mode BN -> ReLU -> 1x1 conv).
    mean = jnp.mean(x, axis=(0, 2, 3), keepdims=True)
    var = jnp.mean(jnp.square(x - mean), axis=(0, 2, 3), keepdims=True)
    xn = (x - mean) / jnp.sqrt(var + 1e-5) * gamma[None, :, None, None] \
        + beta[None, :, None, None]
    xr = jnp.maximum(xn, 0.0)
    ref = jnp.einsum("nchw,oc->nohw", xr, conv_w.reshape(Cout, Cin)) \
        + conv_b[None, :, None, None]

    assert out.shape == (N, Cout, H, W)
    assert jnp.max(jnp.abs(out - ref)) < 1e-4

    print("KERNEL_OK")
</pallas_src>

<mosaic_0001>
module attributes {stable_mosaic.version = 11 : i64} {
  func.func @_stats_kernel(%arg0: i32, %arg1: i32, %arg2: memref<1x8x128xf32, #tpu.memory_space<vmem>>, %arg3: memref<1x8x1xf32, #tpu.memory_space<vmem>>, %arg4: memref<1x8x1xf32, #tpu.memory_space<vmem>>) attributes {dimension_semantics = [#tpu.dimension_semantics<parallel>, #tpu.dimension_semantics<arbitrary>], iteration_bounds = array<i64: 2, 2>, scalar_prefetch = 0 : i64, scratch_operands = 0 : i64, tpu.core_type = #tpu.core_type<tc>, window_params = [{transform_indices = @transform_0, window_bounds = array<i64: 1, 8, 128>}, {transform_indices = @transform_1, window_bounds = array<i64: 1, 8, 1>}, {transform_indices = @transform_2, window_bounds = array<i64: 1, 8, 1>}]} {
    %c0_i32 = arith.constant 0 : i32
    %0 = arith.cmpi eq, %arg1, %c0_i32 : i32
    %1 = arith.extui %0 : i1 to i32
    %c0_i32_0 = arith.constant 0 : i32
    %2 = arith.cmpi ne, %1, %c0_i32_0 : i32
    scf.if %2 {
      %cst_16 = arith.constant 0.000000e+00 : f32
      %22 = vector.broadcast %cst_16 : f32 to vector<8x1xf32>
      %c0_17 = arith.constant 0 : index
      %c0_18 = arith.constant 0 : index
      %c0_19 = arith.constant 0 : index
      %23 = vector.load %arg3[%c0_17, %c0_18, %c0_19] : memref<1x8x1xf32, #tpu.memory_space<vmem>>, vector<1x8x1xf32>
      %24 = vector.shape_cast %23 : vector<1x8x1xf32> to vector<8x1xf32>
      %25 = vector.shape_cast %22 : vector<8x1xf32> to vector<1x8x1xf32>
      tpu.vector_store %arg3[%c0_17, %c0_18, %c0_19], %25 {strides = array<i32>} : memref<1x8x1xf32, #tpu.memory_space<vmem>>, vector<1x8x1xf32>,
      %cst_20 = arith.constant 0.000000e+00 : f32
      %26 = vector.broadcast %cst_20 : f32 to vector<8x1xf32>
      %c0_21 = arith.constant 0 : index
      %c0_22 = arith.constant 0 : index
      %c0_23 = arith.constant 0 : index
      %27 = vector.load %arg4[%c0_21, %c0_22, %c0_23] : memref<1x8x1xf32, #tpu.memory_space<vmem>>, vector<1x8x1xf32>
      %28 = vector.shape_cast %27 : vector<1x8x1xf32> to vector<8x1xf32>
      %29 = vector.shape_cast %26 : vector<8x1xf32> to vector<1x8x1xf32>
      tpu.vector_store %arg4[%c0_21, %c0_22, %c0_23], %29 {strides = array<i32>} : memref<1x8x1xf32, #tpu.memory_space<vmem>>, vector<1x8x1xf32>,
    } else {
    }
    %c0 = arith.constant 0 : index
    %c0_1 = arith.constant 0 : index
    %c0_2 = arith.constant 0 : index
    %3 = vector.load %arg2[%c0, %c0_1, %c0_2] : memref<1x8x128xf32, #tpu.memory_space<vmem>>, vector<1x8x128xf32>
    %4 = vector.shape_cast %3 : vector<1x8x128xf32> to vector<8x128xf32>
    %c0_3 = arith.constant 0 : index
    %c0_4 = arith.constant 0 : index
    %c0_5 = arith.constant 0 : index
    %5 = vector.load %arg3[%c0_3, %c0_4, %c0_5] : memref<1x8x1xf32, #tpu.memory_space<vmem>>, vector<1x8x1xf32>
    %6 = vector.shape_cast %5 : vector<1x8x1xf32> to vector<8x1xf32>
    %cst = arith.constant dense<0.000000e+00> : vector<8xf32>
    %7 = vector.multi_reduction <add>, %4, %cst [1] : vector<8x128xf32> to vector<8xf32>
    %8 = vector.shape_cast %7 : vector<8xf32> to vector<8x1xf32>
    %9 = arith.addf %6, %8 : vector<8x1xf32>
    %c0_6 = arith.constant 0 : index
    %c0_7 = arith.constant 0 : index
    %c0_8 = arith.constant 0 : index
    %10 = vector.load %arg3[%c0_6, %c0_7, %c0_8] : memref<1x8x1xf32, #tpu.memory_space<vmem>>, vector<1x8x1xf32>
    %11 = vector.shape_cast %10 : vector<1x8x1xf32> to vector<8x1xf32>
    %12 = vector.shape_cast %9 : vector<8x1xf32> to vector<1x8x1xf32>
    tpu.vector_store %arg3[%c0_6, %c0_7, %c0_8], %12 {strides = array<i32>} : memref<1x8x1xf32, #tpu.memory_space<vmem>>, vector<1x8x1xf32>,
    %c0_9 = arith.constant 0 : index
    %c0_10 = arith.constant 0 : index
    %c0_11 = arith.constant 0 : index
    %13 = vector.load %arg4[%c0_9, %c0_10, %c0_11] : memref<1x8x1xf32, #tpu.memory_space<vmem>>, vector<1x8x1xf32>
    %14 = vector.shape_cast %13 : vector<1x8x1xf32> to vector<8x1xf32>
    %15 = arith.mulf %4, %4 : vector<8x128xf32>
    %cst_12 = arith.constant dense<0.000000e+00> : vector<8xf32>
    %16 = vector.multi_reduction <add>, %15, %cst_12 [1] : vector<8x128xf32> to vector<8xf32>
    %17 = vector.shape_cast %16 : vector<8xf32> to vector<8x1xf32>
    %18 = arith.addf %14, %17 : vector<8x1xf32>
    %c0_13 = arith.constant 0 : index
    %c0_14 = arith.constant 0 : index
    %c0_15 = arith.constant 0 : index
    %19 = vector.load %arg4[%c0_13, %c0_14, %c0_15] : memref<1x8x1xf32, #tpu.memory_space<vmem>>, vector<1x8x1xf32>
    %20 = vector.shape_cast %19 : vector<1x8x1xf32> to vector<8x1xf32>
    %21 = vector.shape_cast %18 : vector<8x1xf32> to vector<1x8x1xf32>
    tpu.vector_store %arg4[%c0_13, %c0_14, %c0_15], %21 {strides = array<i32>} : memref<1x8x1xf32, #tpu.memory_space<vmem>>, vector<1x8x1xf32>,
    return
  }
  func.func @transform_0(%arg0: i32, %arg1: i32) -> (i32, i32, i32) {
    %c0_i32 = arith.constant 0 : i32
    %c0_i32_0 = arith.constant 0 : i32
    return %arg0, %c0_i32, %arg1 : i32, i32, i32
  }
  func.func @transform_1(%arg0: i32, %arg1: i32) -> (i32, i32, i32) {
    %c0_i32 = arith.constant 0 : i32
    %c0_i32_0 = arith.constant 0 : i32
    %c0_i32_1 = arith.constant 0 : i32
    return %arg0, %c0_i32, %c0_i32_0 : i32, i32, i32
  }
  func.func @transform_2(%arg0: i32, %arg1: i32) -> (i32, i32, i32) {
    %c0_i32 = arith.constant 0 : i32
    %c0_i32_0 = arith.constant 0 : i32
    %c0_i32_1 = arith.constant 0 : i32
    return %arg0, %c0_i32, %c0_i32_0 : i32, i32, i32
  }
}

</mosaic_0001>

<llo_original>
// kernel: tpu_custom_call.1
$region0: #{tpu_custom_call.1}
  #allocation0 [shape = 'u32[]', space=smem, size = 0x4, offset = 0x4, fixed_abs, tag = 'smem constant byte address 0x4 - core index']
  #allocation1 [shape = 'u32[144,128]{1,0:T(1,128)}', space=vmem, size = 0x12000, scoped, tag = 'internal scratch']
  %s0 = inlined_call_operand.hbm [shape: f32[2,8,256], index: 0, kind: input, shape index: {}]
  %s1 = inlined_call_operand.vmem [shape: f32[2,8,1], index: 1, kind: output, shape index: {0}]
  %s2 = inlined_call_operand.vmem [shape: f32[2,8,1], index: 2, kind: output, shape index: {1}]
  %3 = xla_tuple %s1, %s2
  %s4 = sld [smem:[#allocation0]]
  $region53: #{tpu_custom_call.1} parent=0
    _
  %s6 = ssub.s32 1, %s4
  %s7 = scalar_select 0, %s6, %s4
  $region1: #{tpu_custom_call.1} parent=0
    #allocation2 [shape = 'u8[8192]{0}', space=vmem, size = 0x2000, scoped, tag = 'input window, operand 0']
    #allocation3 [shape = 's32[2]{0}', space=sflag, size = 0x8, scoped, tag = 'scoped memory for tpu_custom_call.1']
    %8 = vsyncpa [#allocation3], 0
    %s9 = scalar_lea.sflag [#allocation3], 1
    %10 = vsyncpa %s9, 0
    loop: start=0, step=1, limit=6
    $region2: #{tpu_custom_call.1} parent=1 // loop_pre_header
      _
    $region3: #{tpu_custom_call.1} parent=1 // loop_header
      %s12 = sphi 0, %s16
      %p13 = scmp.ge.s32.totalorder %s12, 6
      %s19 = sphi 0, %s31
      %s20 = sphi 0, %s27
      %s21 = sphi 0, %s19
      %s22 = sphi 0, %s20
      %s23 = sphi 0, %s21
      %s24 = sphi 0, %s22
      %s36 = sphi 0, %s38
      %s39 = sphi 0, %s36
      %s40 = sphi 0, %s39
      %s56 = sphi 0, %s40
      %s62 = sphi 0, %s64
      %s65 = sphi 0, %s62
      %s66 = sphi 0, %s65
      %s82 = sphi 0, %s66
      %s88 = sphi 0, %s90
      %s91 = sphi 0, %s88
      %s92 = sphi 0, %s91
      %s108 = sphi 0, %s92
    $region4: #{tpu_custom_call.1} parent=1 // loop_header_branch
      %15 = sbr.rel (%p13) target = $region8
    $region5: #{tpu_custom_call.1} parent=1 // loop_body
      %s17 = ssub.s32 %s12, 1
      %s18 = ssub.s32 %s12, 2
      %s25 = sadd.s32 1, %s20
      %p26 = scmp.ge.s32.totalorder %s25, 2
      %s27 = scalar_select %p26, 0, %s25
      %s28 = sadd.s32 1, %s19
      %s29 = scalar_select %p26, %s28, %s19
      %p30 = scmp.ge.s32.totalorder %s29, 2
      %s31 = scalar_select %p30, 0, %s29
      %s32 = ssub.s32 %s19, %s31
      %s33 = ssub.s32 %s20, %s27
      %s34 = sor.u32 %s32, %s33
      %p35 = scmp.eq.s32.totalorder %s34, 0
      %s37 = sadd.s32 %s36, 1
      %s38 = scalar_select %p35, %s36, %s37
      %p41 = pneg %p35
      %p42 = scmp.eq.s32.totalorder %s12, 3
      %p43 = por %p41, %p42
      %p44 = scmp.ne.s32.totalorder %s36, %s39
      %p45 = scmp.eq.s32.totalorder %s12, 0
      %p46 = por %p44, %p45
      %p47 = scmp.ne.s32.totalorder %s36, %s39
      %p48 = scmp.eq.s32.totalorder %s17, 3
      %p49 = por %p47, %p48
      %p50 = scmp.ne.s32.totalorder %s39, %s40
      %p51 = scmp.eq.s32.totalorder %s17, 0
      %p52 = por %p50, %p51
      %p53 = scmp.ne.s32.totalorder %s39, %s40
      %p54 = scmp.eq.s32.totalorder %s18, 3
      %p55 = por %p53, %p54
      %p57 = scmp.ne.s32.totalorder %s40, %s56
      %p58 = scmp.eq.s32.totalorder %s18, 0
      %p59 = por %p57, %p58
      %s60 = ssub.s32 %s19, %s31
      %p61 = scmp.eq.s32.totalorder %s60, 0
      %s63 = sadd.s32 %s62, 1
      %s64 = scalar_select %p61, %s62, %s63
      %p67 = pneg %p61
      %p68 = scmp.eq.s32.totalorder %s12, 3
      %p69 = por %p67, %p68
      %p70 = scmp.ne.s32.totalorder %s62, %s65
      %p71 = scmp.eq.s32.totalorder %s12, 0
      %p72 = por %p70, %p71
      %p73 = scmp.ne.s32.totalorder %s62, %s65
      %p74 = scmp.eq.s32.totalorder %s17, 3
      %p75 = por %p73, %p74
      %p76 = scmp.ne.s32.totalorder %s65, %s66
      %p77 = scmp.eq.s32.totalorder %s17, 0
      %p78 = por %p76, %p77
      %p79 = scmp.ne.s32.totalorder %s65, %s66
      %p80 = scmp.eq.s32.totalorder %s18, 3
      %p81 = por %p79, %p80
      %p83 = scmp.ne.s32.totalorder %s66, %s82
      %p84 = scmp.eq.s32.totalorder %s18, 0
      %p85 = por %p83, %p84
      %s86 = ssub.s32 %s19, %s31
      %p87 = scmp.eq.s32.totalorder %s86, 0
      %s89 = sadd.s32 %s88, 1
      %s90 = scalar_select %p87, %s88, %s89
      %p93 = pneg %p87
      %p94 = scmp.eq.s32.totalorder %s12, 3
      %p95 = por %p93, %p94
      %p96 = scmp.ne.s32.totalorder %s88, %s91
      %p97 = scmp.eq.s32.totalorder %s12, 0
      %p98 = por %p96, %p97
      %p99 = scmp.ne.s32.totalorder %s88, %s91
      %p100 = scmp.eq.s32.totalorder %s17, 3
      %p101 = por %p99, %p100
      %p102 = scmp.ne.s32.totalorder %s91, %s92
      %p103 = scmp.eq.s32.totalorder %s17, 0
      %p104 = por %p102, %p103
      %p105 = scmp.ne.s32.totalorder %s91, %s92
      %p106 = scmp.eq.s32.totalorder %s18, 3
      %p107 = por %p105, %p106
      %p109 = scmp.ne.s32.totalorder %s92, %s108
      %p110 = scmp.eq.s32.totalorder %s18, 0
      %p111 = por %p109, %p110
      %p112 = scmp.le.s32.totalorder 1, %s12
      %p113 = scmp.lt.s32.totalorder %s12, 5
      %p114 = pnand %p112, %p113
      %p115 = pneg %p114
      // Predicated region
      $region9: #{tpu_custom_call.1} parent=5 // pred_check
        _
      $region10: #{tpu_custom_call.1} parent=5 // pred_check_branch
        %117 = sbr.rel (%p114) target = $region12
      $region11: #{tpu_custom_call.1} parent=5 // pred_region
        %s118 = ssub.s32 %s12, 1
      $region12: #{tpu_custom_call.1} parent=5 // pred_fallthru
        _
      %p119 = scmp.lt.s32.totalorder %s12, 4
      // Predicated region
      $region13: #{tpu_custom_call.1} parent=5 // pred_check
        %p120 = pneg %p119
      $region14: #{tpu_custom_call.1} parent=5 // pred_check_branch
        %122 = sbr.rel (%p120) target = $region16
      $region15: #{tpu_custom_call.1} parent=5 // pred_region
        // Predicated region
        $region17: #{tpu_custom_call.1} parent=15 // pred_check
          %p123 = pneg %p46
        $region18: #{tpu_custom_call.1} parent=15 // pred_check_branch
          %125 = sbr.rel (%p123) target = $region20
        $region19: #{tpu_custom_call.1} parent=15 // pred_region
          %s126 = sand.u32 %s36, 1
          %s127 = scalar_lea.sflag [#allocation3], %s126
          %s128 = sand.u32 %s36, 1
          %s129 = smul.addr %s128, 8
          %s130 = scalar_lea.vmem [#allocation2], %s129
          %s132 = ssub.s32 128, 128
          %133 = vsyncadd %s127, %s132
          %s134 = smul.addr %s19, 2
          %s135 = sadd.s32 %s20, %s134
          %s136 = smul.addr %s135, 128
          %s137 = scalar_lea.hbm %s0, %s136
          %s139 = sshll.u32 %s130, 4
          %s140 = int_to_ptr.vmem [resolvable:$true] %s139
          %142 = dma.hbm_to_vmem [thread:$0]  %s137, 128, %s140, %s127
        $region20: #{tpu_custom_call.1} parent=15 // pred_fallthru
          _
      $region16: #{tpu_custom_call.1} parent=5 // pred_fallthru
        _
      %p143 = scmp.le.s32.totalorder 1, %s12
      %p144 = scmp.lt.s32.totalorder %s12, 5
      %p145 = pnand %p143, %p144
      %p146 = pneg %p145
      // Predicated region
      $region21: #{tpu_custom_call.1} parent=5 // pred_check
        _
      $region22: #{tpu_custom_call.1} parent=5 // pred_check_branch
        %148 = sbr.rel (%p145) target = $region24
      $region23: #{tpu_custom_call.1} parent=5 // pred_region
        %s149 = ssub.s32 %s12, 1
        %s150 = sand.u32 %s39, 1
        %s151 = scalar_lea.sflag [#allocation3], %s150
        %s152 = sand.u32 %s39, 1
        %s153 = smul.addr %s152, 8
        %s154 = scalar_lea.vmem [#allocation2], %s153
        // Predicated region
        $region25: #{tpu_custom_call.1} parent=23 // pred_check
          %p155 = pneg %p52
        $region26: #{tpu_custom_call.1} parent=23 // pred_check_branch
          %157 = sbr.rel (%p155) target = $region28
        $region27: #{tpu_custom_call.1} parent=23 // pred_region
          %158 = dma.done %s151, 128
        $region28: #{tpu_custom_call.1} parent=23 // pred_fallthru
          _
        %s159 = sand.u32 %s39, 1
        %s160 = scalar_lea.sflag [#allocation3], %s159
        %s161 = sand.u32 %s39, 1
        %s162 = smul.addr %s161, 8
        %s163 = scalar_lea.vmem [#allocation2], %s162
        %p164 = pneg %p52
        %p165 = pneg %p49
        %p166 = pneg %p78
        %p167 = pneg %p75
        %p168 = scmp.lt.s32.totalorder %s21, 1
        %s169 = scalar_select %p168, %s21, 1
        %s170 = smul.addr %s169, 8
        %s171 = scalar_lea.vmem %s1, %s170
        %p172 = pneg %p104
        %p173 = pneg %p101
        %p174 = scmp.lt.s32.totalorder %s21, 1
        %s175 = scalar_select %p174, %s21, 1
        %s176 = smul.addr %s175, 8
        %s177 = scalar_lea.vmem %s2, %s176
        %p178 = scmp.lt.s32.totalorder %s21, 1
        %s179 = scalar_select %p178, %s21, 1
        %s180 = smul.addr %s179, 8
        %s181 = scalar_lea.vmem %s1, %s180
        %p182 = scmp.lt.s32.totalorder %s21, 1
        %s183 = scalar_select %p182, %s21, 1
        %s184 = smul.addr %s183, 8
        %s185 = scalar_lea.vmem %s2, %s184
        %p186 = scmp.eq.s32.totalorder %s22, 0
        // Predicated region
        $region29: #{tpu_custom_call.1} parent=23 // pred_check
          %p187 = pneg %p186
        $region30: #{tpu_custom_call.1} parent=23 // pred_check_branch
          %189 = sbr.rel (%p187) target = $region32
        $region31: #{tpu_custom_call.1} parent=23 // pred_region
          %vm190 = vcmask 7168
          %191 = vst.msk [vmem:[%s181] sm:$0xff] %vm190, 0.0
          %192 = vst.msk [vmem:[%s185] sm:$0xff] %vm190, 0.0
        $region32: #{tpu_custom_call.1} parent=23 // pred_fallthru
          _
        %v193 = vld [vmem:[%s154] sm:$0xff]
        %v194 = vld [vmem:[%s181] sm:$0xff]
        %195 = vadd.xlane.f32.xlu0 %v193
        %v196 = vpop.xlane.xlu0 %195
        %v197 = vadd.f32 %v194, %v196
        %vm198 = vcmask 7168
        %199 = vst.msk [vmem:[%s181] sm:$0xff] %vm198, %v197
        %v200 = vld [vmem:[%s185] sm:$0xff]
        %v201 = vmul.f32 %v193, %v193
        %202 = vadd.xlane.f32.xlu0 %v201
        %v203 = vpop.xlane.xlu0 %202
        %v204 = vadd.f32 %v200, %v203
        %205 = vst.msk [vmem:[%s185] sm:$0xff] %vm198, %v204
        %p206 = scmp.lt.s32.totalorder %s21, 1
        %s207 = scalar_select %p206, %s21, 1
        %s208 = smul.addr %s207, 8
        %s209 = scalar_lea.vmem %s1, %s208
        %p210 = scmp.lt.s32.totalorder %s21, 1
        %s211 = scalar_select %p210, %s21, 1
        %s212 = smul.addr %s211, 8
        %s213 = scalar_lea.vmem %s2, %s212
        // Predicated region
        $region33: #{tpu_custom_call.1} parent=23 // pred_check
          %p214 = pneg %p75
        $region34: #{tpu_custom_call.1} parent=23 // pred_check_branch
          %216 = sbr.rel (%p214) target = $region36
        $region35: #{tpu_custom_call.1} parent=23 // pred_region
          _
        $region36: #{tpu_custom_call.1} parent=23 // pred_fallthru
          _
        // Predicated region
        $region37: #{tpu_custom_call.1} parent=23 // pred_check
          %p217 = pneg %p101
        $region38: #{tpu_custom_call.1} parent=23 // pred_check_branch
          %219 = sbr.rel (%p217) target = $region40
        $region39: #{tpu_custom_call.1} parent=23 // pred_region
          _
        $region40: #{tpu_custom_call.1} parent=23 // pred_fallthru
          _
      $region24: #{tpu_custom_call.1} parent=5 // pred_fallthru
        _
      %p220 = scmp.le.s32.totalorder 2, %s12
      // Predicated region
      $region41: #{tpu_custom_call.1} parent=5 // pred_check
        %p221 = pneg %p220
      $region42: #{tpu_custom_call.1} parent=5 // pred_check_branch
        %223 = sbr.rel (%p221) target = $region44
      $region43: #{tpu_custom_call.1} parent=5 // pred_region
        %s224 = ssub.s32 %s12, 2
        // Predicated region
        $region45: #{tpu_custom_call.1} parent=43 // pred_check
          %p225 = pneg %p81
        $region46: #{tpu_custom_call.1} parent=43 // pred_check_branch
          %227 = sbr.rel (%p225) target = $region48
        $region47: #{tpu_custom_call.1} parent=43 // pred_region
          %p228 = scmp.lt.s32.totalorder %s23, 1
          %s229 = scalar_select %p228, %s23, 1
          %s230 = smul.addr %s229, 8
          %s231 = scalar_lea.vmem %s1, %s230
        $region48: #{tpu_custom_call.1} parent=43 // pred_fallthru
          _
        // Predicated region
        $region49: #{tpu_custom_call.1} parent=43 // pred_check
          %p232 = pneg %p107
        $region50: #{tpu_custom_call.1} parent=43 // pred_check_branch
          %234 = sbr.rel (%p232) target = $region52
        $region51: #{tpu_custom_call.1} parent=43 // pred_region
          %p235 = scmp.lt.s32.totalorder %s23, 1
          %s236 = scalar_select %p235, %s23, 1
          %s237 = smul.addr %s236, 8
          %s238 = scalar_lea.vmem %s2, %s237
        $region52: #{tpu_custom_call.1} parent=43 // pred_fallthru
          _
      $region44: #{tpu_custom_call.1} parent=5 // pred_fallthru
        _
    $region6: #{tpu_custom_call.1} parent=1 // loop_footer
      %s16 = sadd.s32 1, %s12
    $region7: #{tpu_custom_call.1} parent=1 // loop_footer_branch
      %11 = sbr.rel target = $region3
    $region8: #{tpu_custom_call.1} parent=1 // loop_exit
      _
    %239 = vsyncpa [#allocation3], 1
    %s240 = scalar_lea.sflag [#allocation3], 1
    %241 = vsyncpa %s240, 1

</llo_original>
